<compile_context>
chip_gen: v6e
topology: v6e:2x2x1
jax: 0.10.0
libtpu: 0.0.40
codegen_flags: <defaults>
</compile_context>

<pallas_src>
import functools

import jax
import jax.numpy as jnp
from jax.experimental import pallas as pl
from jax.experimental.pallas import tpu as pltpu

_MASK_VALUE = -1e30  # large finite negative (avoids -inf - -inf NaN paths)


# ---------------------------------------------------------------------------
# Kernel 1: fused QKV projection  (x @ Wqkv_t), scale pre-folded into Wq
# ---------------------------------------------------------------------------
def _qkv_proj_kernel(x_ref, w_ref, o_ref):
    # x_ref: (TM, dim) bf16, w_ref: (dim, 3A) bf16 (Q rows pre-scaled).
    o_ref[...] = jnp.dot(x_ref[...], w_ref[...],
                         preferred_element_type=jnp.float32).astype(o_ref.dtype)


# ---------------------------------------------------------------------------
# Kernel 2: flash attention (online softmax, per-head loop) + output proj
# ---------------------------------------------------------------------------
def _flash_attn_proj_kernel(q_ref, k_ref, v_ref, wp_ref, bp_ref, o_ref,
                            m_sc, l_sc, acc_sc, *, n_valid, needs_mask):
    ki = pl.program_id(2)
    H, TQ, hd = q_ref.shape          # (H, TQ, hd)
    TK = v_ref.shape[1]              # (H, TK, hd)
    dim = o_ref.shape[-1]            # (TQ, dim)

    @pl.when(ki == 0)
    def _init():
        m_sc[...] = jnp.full(m_sc.shape, -jnp.inf, dtype=m_sc.dtype)
        l_sc[...] = jnp.zeros(l_sc.shape, dtype=l_sc.dtype)
        acc_sc[...] = jnp.zeros(acc_sc.shape, dtype=acc_sc.dtype)

    # Key-validity mask for the padded tail (built only when N was padded;
    # static Python branch => zero cost in the common divisible case).
    if needs_mask:
        key_pos = ki * TK + jax.lax.broadcasted_iota(jnp.int32, (TQ, TK), 1)
        kv_mask = key_pos < n_valid
    else:
        kv_mask = None

    # One head at a time: only a single (TQ, TK) f32 score/prob tile is live,
    # so head h's exp (EUP) can overlap head h+1's matmuls (MXU), and VMEM
    # temp footprint is O(TQ*TK) instead of O(H*TQ*TK).
    def head_body(h, carry):
        q = q_ref[h]          # (TQ, hd) bf16, 1/sqrt(hd) already folded in
        kt = k_ref[h]         # (hd, TK) bf16, pre-transposed => lane-dense K
        v = v_ref[h]          # (TK, hd) bf16

        s = jnp.dot(q, kt, preferred_element_type=jnp.float32)   # (TQ, TK)
        if kv_mask is not None:
            s = jnp.where(kv_mask, s, _MASK_VALUE)

        m_prev = m_sc[h]                                           # (TQ, 1)
        m_new = jnp.maximum(m_prev, s.max(axis=-1, keepdims=True))
        alpha = jnp.exp(m_prev - m_new)
        p = jnp.exp(s - m_new)

        l_sc[h] = alpha * l_sc[h] + p.sum(axis=-1, keepdims=True)
        acc_sc[h] = alpha * acc_sc[h] + jnp.dot(
            p.astype(v.dtype), v, preferred_element_type=jnp.float32)
        m_sc[h] = m_new
        return carry

    jax.lax.fori_loop(0, H, head_body, 0, unroll=True)

    @pl.when(ki == pl.num_programs(2) - 1)
    def _finalize():
        # Per-head normalization + output projection accumulated directly
        # into one (TQ, dim) f32 value (no (H, TQ, dim) temp, no head-sum);
        # bias added once; lane-dense (TQ, dim) store.
        def proj_body(h, y):
            inv_l = pl.reciprocal(l_sc[h], approx=True)            # EUP slot
            o_h = (acc_sc[h] * inv_l).astype(wp_ref.dtype)         # (TQ, hd)
            return y + jnp.dot(o_h, wp_ref[h],
                               preferred_element_type=jnp.float32)  # (TQ, dim)

        y = jax.lax.fori_loop(0, H, proj_body,
                              jnp.zeros((TQ, dim), jnp.float32), unroll=True)
        o_ref[...] = (y + bp_ref[...]).astype(o_ref.dtype)


# ---------------------------------------------------------------------------
# Tiling helpers
# ---------------------------------------------------------------------------
def _pick_row_tile(n, candidates=(1024, 512, 256, 128, 64, 32, 16, 8)):
    for t in candidates:
        if n >= t and n % t == 0:
            return t
    return n


def _seq_tiling(n):
    """Return (padded_n, seq_tile).

    Prefers MXU-aligned 256/128 tiles.  Pads N up to a multiple of 128 (with
    in-kernel key masking) for ViT-style lengths like 197; small N (< 128)
    uses a single full-extent tile (no padding / masking needed)."""
    for t in (256, 128):
        if n % t == 0:
            return n, t
    if n > 128:
        return ((n + 127) // 128) * 128, 128
    return n, n


# ---------------------------------------------------------------------------
# One-time weight preparation (hoist to model init)
# ---------------------------------------------------------------------------
def prepare_attention_params(w_qkv, w_proj, b_proj, *, num_heads,
                             attn_head_dim=None, qk_scale=None):
    three_a, dim = w_qkv.shape                       # (3*A, dim)
    A = three_a // 3
    head_dim = (dim // num_heads) if attn_head_dim is None else attn_head_dim
    assert A == num_heads * head_dim
    assert w_proj.shape == (dim, A)
    scale = qk_scale if qk_scale is not None else head_dim ** (-0.5)

    w_qkv_t = jnp.transpose(w_qkv)                   # (dim, 3A), K-major RHS
    w_qkv_t = w_qkv_t.at[:, :A].multiply(scale)      # fold 1/sqrt(hd) into Wq
    w_qkv_t = w_qkv_t.astype(jnp.bfloat16)
    w_proj_h = jnp.transpose(w_proj).reshape(num_heads, head_dim, dim)
    w_proj_h = w_proj_h.astype(jnp.bfloat16)         # (H, hd, dim)
    b_proj2d = b_proj.reshape(1, dim).astype(jnp.float32)
    return {"w_qkv_t": w_qkv_t, "w_proj_h": w_proj_h, "b_proj2d": b_proj2d,
            "num_heads": num_heads, "head_dim": head_dim}


# ---------------------------------------------------------------------------
# Forward wrapper
# ---------------------------------------------------------------------------
def attention_pallas(x, params, *, out_dtype=None,
                     vmem_limit_bytes=32 * 1024 * 1024):
    """x: (B, N, dim).  params: dict from prepare_attention_params()."""
    w_qkv_t = params["w_qkv_t"]       # (dim, 3A) bf16
    w_proj_h = params["w_proj_h"]     # (H, hd, dim) bf16
    b_proj2d = params["b_proj2d"]     # (1, dim) f32
    H, hd = params["num_heads"], params["head_dim"]

    B, N, dim = x.shape
    A = H * hd
    assert w_qkv_t.shape == (dim, 3 * A)
    # bf16 output halves HBM writeback if the surrounding model tolerates it;
    # default preserves the module's dtype semantics.
    out_dtype = x.dtype if out_dtype is None else out_dtype

    # Sequence tiling; pad + mask for non-128-divisible N (e.g. ViT N=197).
    N_pad, TQ = _seq_tiling(N)
    TK = TQ
    needs_mask = N_pad != N
    if needs_mask:
        x = jnp.pad(x, ((0, 0), (0, N_pad - N), (0, 0)))

    # ----------------------- call 1: fused QKV projection --------------------
    BN = B * N_pad
    TM = _pick_row_tile(BN)
    x2d = x.reshape(BN, dim).astype(jnp.bfloat16)     # bf16 cast in wrapper

    flops_qkv = 2 * BN * dim * 3 * A
    bytes_qkv = 2 * BN * dim + 2 * dim * 3 * A + 2 * BN * 3 * A

    qkv = pl.pallas_call(
        _qkv_proj_kernel,
        out_shape=jax.ShapeDtypeStruct((BN, 3 * A), jnp.bfloat16),
        grid_spec=pltpu.PrefetchScalarGridSpec(
            num_scalar_prefetch=0,
            grid=(BN // TM,),
            in_specs=[
                pl.BlockSpec((TM, dim), lambda i: (i, 0)),
                pl.BlockSpec((dim, 3 * A), lambda i: (0, 0)),
            ],
            out_specs=pl.BlockSpec((TM, 3 * A), lambda i: (i, 0)),
        ),
        compiler_params=pltpu.CompilerParams(
            dimension_semantics=("parallel",),
            vmem_limit_bytes=vmem_limit_bytes,
        ),
        cost_estimate=pl.CostEstimate(
            flops=int(flops_qkv), transcendentals=0,
            bytes_accessed=int(bytes_qkv)),
    )(x2d, w_qkv_t)

    # Wrapper-side layout plumbing: q,v head-major; K pre-transposed so the
    # score matmul needs no in-kernel transpose and K tiles are lane-dense.
    qkv5 = qkv.reshape(B, N_pad, 3, H, hd)
    q = jnp.transpose(qkv5[:, :, 0], (0, 2, 1, 3))    # (B, H, N_pad, hd)
    k_t = jnp.transpose(qkv5[:, :, 1], (0, 2, 3, 1))  # (B, H, hd, N_pad)
    v = jnp.transpose(qkv5[:, :, 2], (0, 2, 1, 3))    # (B, H, N_pad, hd)

    # ---------------- call 2: flash attention + output projection ------------
    NQ, NK = N_pad // TQ, N_pad // TK

    flops_attn = 4 * B * H * N_pad * N_pad * hd + 2 * B * N_pad * A * dim
    trans_attn = B * H * N_pad * N_pad
    bytes_attn = (2 * B * H * N_pad * hd * (1 + 2 * NQ)          # q + k/v
                  + 2 * A * dim + 4 * dim
                  + jnp.dtype(out_dtype).itemsize * B * N_pad * dim)

    kernel = functools.partial(_flash_attn_proj_kernel,
                               n_valid=N, needs_mask=needs_mask)

    # NOTE(v7x): with 2 TensorCores and B == 1, the parallel work is only NQ
    # tiles; folding H into a leading parallel axis (un-fusing the output
    # projection) would keep both cores busy for B=1 decode-style calls.
    # NOTE(v6e): vmem_limit_bytes can be raised to 64-96 MiB (128 MiB phys).
    out = pl.pallas_call(
        kernel,
        out_shape=jax.ShapeDtypeStruct((B, N_pad, dim), out_dtype),
        grid_spec=pltpu.PrefetchScalarGridSpec(
            num_scalar_prefetch=0,
            grid=(B, NQ, NK),
            in_specs=[
                pl.BlockSpec((None, H, TQ, hd), lambda b, qi, ki: (b, 0, qi, 0)),
                pl.BlockSpec((None, H, hd, TK), lambda b, qi, ki: (b, 0, 0, ki)),
                pl.BlockSpec((None, H, TK, hd), lambda b, qi, ki: (b, 0, ki, 0)),
                pl.BlockSpec((H, hd, dim), lambda b, qi, ki: (0, 0, 0)),
                pl.BlockSpec((1, dim), lambda b, qi, ki: (0, 0)),
            ],
            out_specs=pl.BlockSpec((None, TQ, dim), lambda b, qi, ki: (b, qi, 0)),
            scratch_shapes=[
                pltpu.VMEM((H, TQ, 1), jnp.float32),     # running max  m
                pltpu.VMEM((H, TQ, 1), jnp.float32),     # running sum  l
                pltpu.VMEM((H, TQ, hd), jnp.float32),    # per-head out acc
            ],
        ),
        compiler_params=pltpu.CompilerParams(
            dimension_semantics=("parallel", "parallel", "arbitrary"),
            vmem_limit_bytes=vmem_limit_bytes,
        ),
        cost_estimate=pl.CostEstimate(
            flops=int(flops_attn), transcendentals=int(trans_attn),
            bytes_accessed=int(bytes_attn)),
    )(q, k_t, v, w_proj_h, b_proj2d)

    if needs_mask:
        out = out[:, :N, :]
    return out


# ---------------------------------------------------------------------------
# Pure-JAX reference mirroring the PyTorch forward exactly (f32)
# ---------------------------------------------------------------------------
def attention_reference(x, w_qkv, w_proj, b_proj, *, num_heads):
    B, N, C = x.shape
    head_dim = C // num_heads
    scale = head_dim ** (-0.5)

    qkv = jnp.einsum("bnc,dc->bnd", x, w_qkv)                  # (B, N, 3C)
    qkv = qkv.reshape(B, N, 3, num_heads, head_dim)
    qkv = jnp.transpose(qkv, (2, 0, 3, 1, 4))                  # (3, B, H, N, hd)
    q, k, v = qkv[0], qkv[1], qkv[2]
    q = q * scale
    attn = jnp.einsum("bhqd,bhkd->bhqk", q, k)
    attn = jax.nn.softmax(attn, axis=-1)
    out = jnp.einsum("bhqk,bhkd->bhqd", attn, v)               # (B, H, N, hd)
    out = jnp.transpose(out, (0, 2, 1, 3)).reshape(B, N, -1)   # (B, N, C)
    return jnp.einsum("bnd,cd->bnc", out, w_proj) + b_proj


if __name__ == "__main__":
    key = jax.random.PRNGKey(0)

    def run_case(B, N, C, num_heads, case_key):
        kx, kw1, kw2, kb = jax.random.split(case_key, 4)
        x = jax.random.normal(kx, (B, N, C), dtype=jnp.float32)
        w_qkv = 0.05 * jax.random.normal(kw1, (3 * C, C), dtype=jnp.float32)
        w_proj = 0.05 * jax.random.normal(kw2, (C, C), dtype=jnp.float32)
        b_proj = 0.01 * jax.random.normal(kb, (C,), dtype=jnp.float32)

        params = prepare_attention_params(w_qkv, w_proj, b_proj,
                                          num_heads=num_heads)
        out = attention_pallas(x, params)
        out = jax.block_until_ready(out)

        ref = attention_reference(x, w_qkv, w_proj, b_proj,
                                  num_heads=num_heads)
        assert out.shape == (B, N, C)
        # bf16 MXU inputs (f32 accumulation) => looser tolerance than pure f32.
        assert jnp.allclose(out, ref, rtol=2e-2, atol=2e-2), (
            f"mismatch vs reference (B={B}, N={N}, C={C})")

    k1, k2 = jax.random.split(key)
    # Small divisible case: Attention(dim=32, num_heads=4), B=2, N=16.
    run_case(2, 16, 32, 4, k1)
    # ViT-style non-128-divisible length (cls token): exercises the N-padding
    # + in-kernel key-masking path.
    run_case(1, 197, 32, 4, k2)

    print("KERNEL_OK")
</pallas_src>

<mosaic_0001>
module attributes {stable_mosaic.version = 11 : i64} {
  func.func @_qkv_proj_kernel(%arg0: i32, %arg1: memref<32x32xbf16, #tpu.memory_space<vmem>>, %arg2: memref<32x96xbf16, #tpu.memory_space<vmem>>, %arg3: memref<32x96xbf16, #tpu.memory_space<vmem>>) attributes {dimension_semantics = [#tpu.dimension_semantics<parallel>], iteration_bounds = array<i64: 1>, scalar_prefetch = 0 : i64, scratch_operands = 0 : i64, tpu.core_type = #tpu.core_type<tc>, window_params = [{transform_indices = @transform_0, window_bounds = array<i64: 32, 32>}, {pipeline_mode = #tpu.pipeline_mode<synchronous>, transform_indices = @transform_1, window_bounds = array<i64: 32, 96>}, {transform_indices = @transform_2, window_bounds = array<i64: 32, 96>}]} {
    %c0 = arith.constant 0 : index
    %c0_0 = arith.constant 0 : index
    %0 = vector.load %arg1[%c0, %c0_0] : memref<32x32xbf16, #tpu.memory_space<vmem>>, vector<32x32xbf16>
    %c0_1 = arith.constant 0 : index
    %c0_2 = arith.constant 0 : index
    %1 = vector.load %arg2[%c0_1, %c0_2] : memref<32x96xbf16, #tpu.memory_space<vmem>>, vector<32x96xbf16>
    %cst = arith.constant dense<0.000000e+00> : vector<32x96xf32>
    %2 = tpu.matmul %0, %1, %cst {dimension_numbers = #tpu.dot_dimension_numbers<[1], [0], [0], [1], [0, 0, 1, 1], [], []>} : vector<32x32xbf16>, vector<32x96xbf16>, vector<32x96xf32> -> vector<32x96xf32>
    %3 = arith.truncf %2 : vector<32x96xf32> to vector<32x96xbf16>
    %c0_3 = arith.constant 0 : index
    %c0_4 = arith.constant 0 : index
    %4 = vector.load %arg3[%c0_3, %c0_4] : memref<32x96xbf16, #tpu.memory_space<vmem>>, vector<32x96xbf16>
    tpu.vector_store %arg3[%c0_3, %c0_4], %3 {strides = array<i32>} : memref<32x96xbf16, #tpu.memory_space<vmem>>, vector<32x96xbf16>,
    return
  }
  func.func @transform_0(%arg0: i32) -> (i32, i32) {
    %c0_i32 = arith.constant 0 : i32
    %c0_i32_0 = arith.constant 0 : i32
    return %arg0, %c0_i32 : i32, i32
  }
  func.func @transform_1(%arg0: i32) -> (i32, i32) {
    %c0_i32 = arith.constant 0 : i32
    %c0_i32_0 = arith.constant 0 : i32
    %c0_i32_1 = arith.constant 0 : i32
    return %c0_i32, %c0_i32_0 : i32, i32
  }
  func.func @transform_2(%arg0: i32) -> (i32, i32) {
    %c0_i32 = arith.constant 0 : i32
    %c0_i32_0 = arith.constant 0 : i32
    return %arg0, %c0_i32 : i32, i32
  }
}

</mosaic_0001>

<llo_original>
// kernel: tpu_custom_call.1
$region0: #{tpu_custom_call.1}
  #allocation0 [shape = 'u32[]', space=smem, size = 0x4, offset = 0x4, fixed_abs, tag = 'smem constant byte address 0x4 - core index']
  #allocation1 [shape = 'u32[144,128]{1,0:T(1,128)}', space=vmem, size = 0x12000, scoped, tag = 'internal scratch']
  %s0 = inlined_call_operand.hbm [shape: bf16[32,32], index: 0, kind: input, shape index: {}]
  %s1 = inlined_call_operand.hbm [shape: bf16[32,96], index: 1, kind: input, shape index: {}]
  %s2 = inlined_call_operand.hbm [shape: bf16[32,96], index: 2, kind: output, shape index: {}]
  %s3 = sld [smem:[#allocation0]]
  $region26: #{tpu_custom_call.1} parent=0
    _
  %s5 = ssub.s32 1, %s3
  %s6 = scalar_select 0, %s5, %s3
  $region1: #{tpu_custom_call.1} parent=0
    #allocation2 [shape = 'u8[8192]{0}', space=vmem, size = 0x2000, scoped, tag = 'input window, operand 0, single buffered']
    #allocation3 [shape = 's32[1]{0}', space=sflag, size = 0x4, scoped, tag = 'scoped memory for tpu_custom_call.1']
    #allocation4 [shape = 's32[1]{0}', space=sflag, size = 0x4, scoped, tag = 'scoped memory for tpu_custom_call.1']
    #allocation5 [shape = 'u8[8192]{0}', space=vmem, size = 0x2000, scoped, tag = 'input window, operand 1, single buffered']
    #allocation6 [shape = 's32[1]{0}', space=sflag, size = 0x4, scoped, tag = 'scoped memory for tpu_custom_call.1']
    #allocation7 [shape = 'u8[8192]{0}', space=vmem, size = 0x2000, scoped, tag = 'output window, operand 0, single buffered']
    %7 = vsyncpa [#allocation3], 0
    %8 = vsyncpa [#allocation6], 0
    %9 = vsyncpa [#allocation4], 0
    // Predicated region
    $region2: #{tpu_custom_call.1} parent=1 // pred_check
      _
    $region3: #{tpu_custom_call.1} parent=1 // pred_check_branch
      %11 = sbr.rel (0) target = $region5
    $region4: #{tpu_custom_call.1} parent=1 // pred_region
      %s13 = ssub.s32 256, 256
      %14 = vsyncadd [#allocation3], %s13
      %s15 = sshll.u32 [#allocation2], 4
      %s16 = int_to_ptr.vmem [resolvable:$true] %s15
      %21 = dma.hbm_to_vmem [thread:$0]  %s0, 256, %s16, [#allocation3], 64, 64, 4
    $region5: #{tpu_custom_call.1} parent=1 // pred_fallthru
      _
    // Predicated region
    $region6: #{tpu_custom_call.1} parent=1 // pred_check
      _
    $region7: #{tpu_custom_call.1} parent=1 // pred_check_branch
      %23 = sbr.rel (0) target = $region9
    $region8: #{tpu_custom_call.1} parent=1 // pred_region
      %s25 = ssub.s32 256, 256
      %26 = vsyncadd [#allocation6], %s25
      %s27 = sshll.u32 [#allocation5], 4
      %s28 = int_to_ptr.vmem [resolvable:$true] %s27
      %33 = dma.hbm_to_vmem [thread:$0]  %s1, 256, %s28, [#allocation6], 64, 64, 4
    $region9: #{tpu_custom_call.1} parent=1 // pred_fallthru
      _
    // Predicated region
    $region10: #{tpu_custom_call.1} parent=1 // pred_check
      _
    $region11: #{tpu_custom_call.1} parent=1 // pred_check_branch
      %35 = sbr.rel (0) target = $region13
    $region12: #{tpu_custom_call.1} parent=1 // pred_region
      %36 = dma.done [#allocation3], 256
    $region13: #{tpu_custom_call.1} parent=1 // pred_fallthru
      _
    // Predicated region
    $region14: #{tpu_custom_call.1} parent=1 // pred_check
      _
    $region15: #{tpu_custom_call.1} parent=1 // pred_check_branch
      %38 = sbr.rel (0) target = $region17
    $region16: #{tpu_custom_call.1} parent=1 // pred_region
      %39 = dma.done [#allocation6], 256
    $region17: #{tpu_custom_call.1} parent=1 // pred_fallthru
      _
    %v41 = vld [vmem:[#allocation2] sm:$0xf]
    %v42 = vld [vmem:[#allocation2 + $0x4] sm:$0xf]
    %v43 = vld [vmem:[#allocation2 + $0x8] sm:$0xf]
    %v44 = vld [vmem:[#allocation2 + $0xc] sm:$0xf]
    %v45 = vld [vmem:[#allocation5] sm:$0xf]
    %v46 = vld [vmem:[#allocation5 + $0x4] sm:$0xf]
    %v47 = vld [vmem:[#allocation5 + $0x8] sm:$0xf]
    %v48 = vld [vmem:[#allocation5 + $0xc] sm:$0xf]
    %v53 = vunpack.c.l.b16 %v41
    %v54 = vunpack.c.l.b16 %v42
    %v55 = vunpack.c.l.b16 %v43
    %v56 = vunpack.c.l.b16 %v44
    %v57 = vpack.c.b16 %v54, %v53
    %v58 = vpack.c.b16 %v56, %v55
    %v63 = vunpack.c.l.b16 %v45
    %v64 = vunpack.c.l.b16 %v46
    %v65 = vunpack.c.l.b16 %v47
    %v66 = vunpack.c.l.b16 %v48
    %v67 = vpack.c.b16 %v64, %v63
    %v68 = vpack.c.b16 %v66, %v65
    %vm71 = vcmask 261120
    %v73 = vsel %vm71, %v57, 0
    %v76 = vsel %vm71, %v58, 0
    %78 = vmatprep.subr.bf16.mxu0 0
    %79 = vmatpush1.bf16.msra.mxu0 0
    %80 = vmatprep.subr.bf16.mxu0 0
    %81 = vmatpush1.bf16.msra.mxu0 0
    %82 = vmatprep.subr.bf16.mxu0 0
    %83 = vmatpush1.bf16.msra.mxu0 0
    %84 = vmatprep.subr.bf16.mxu0 0
    %85 = vmatpush1.bf16.msra.mxu0 0
    %86 = vmatprep.subr.bf16.mxu0 0
    %87 = vmatpush1.bf16.msra.mxu0 0
    %88 = vmatprep.subr.bf16.mxu0 0
    %89 = vmatpush1.bf16.msra.mxu0 0
    %90 = vmatprep.subr.bf16.mxu0 0
    %91 = vmatpush1.bf16.msra.mxu0 %v68
    %92 = vmatprep.subr.bf16.mxu0 0
    %93 = vmatpush1.bf16.msra.mxu0 %v67
    %94 = vmatprep.subr.bf16.mxu0 0
    %95 = vmatpush2.bf16.msra.mxu0 0
    %96 = vmatprep.subr.bf16.mxu0 0
    %97 = vmatpush2.bf16.msra.mxu0 0
    %98 = vmatprep.subr.bf16.mxu0 0
    %99 = vmatpush2.bf16.msra.mxu0 0
    %100 = vmatprep.subr.bf16.mxu0 0
    %101 = vmatpush2.bf16.msra.mxu0 0
    %102 = vmatprep.subr.bf16.mxu0 0
    %103 = vmatpush2.bf16.msra.mxu0 0
    %104 = vmatprep.subr.bf16.mxu0 0
    %105 = vmatpush2.bf16.msra.mxu0 0
    %106 = vmatprep.subr.bf16.mxu0 0
    %107 = vmatpush2.bf16.msra.mxu0 0
    %108 = vmatprep.subr.bf16.mxu0 0
    %109 = vmatpush2.bf16.msra.mxu0 0
    %110 = vmatprep.mubr.bf16.mxu0 0
    %111 = vmatmul.mubr.bf16.gmra.mxu0 %v73
    %v112 = vpop.f32.mrf.mxu0
    %v113 = vadd.f32 0.0, %v112
    %v114 = vpop.f32.mrf.mxu0
    %v115 = vpop.f32.mrf.mxu0
    %v116 = vadd.f32 0.0, %v115
    %v117 = vpop.f32.mrf.mxu0
    %118 = vmatprep.mubr.bf16.mxu0 0
    %119 = vmatmul.mubr.bf16.gmra.mxu0 %v76
    %v120 = vpop.f32.mrf.mxu0
    %v121 = vadd.f32 0.0, %v120
    %v122 = vpop.f32.mrf.mxu0
    %v123 = vpop.f32.mrf.mxu0
    %v124 = vadd.f32 0.0, %v123
    %v125 = vpop.f32.mrf.mxu0
    %126 = vdwg.mxu0
    %v127 = vpack.c.bf16 %v116, %v113
    %v128 = vpack.c.bf16 %v124, %v121
    %v131 = vunpack.c.l.b16 %v127
    %v132 = vunpack.c.h.b16 %v127
    %v133 = vunpack.c.l.b16 %v128
    %v134 = vunpack.c.h.b16 %v128
    %v135 = vpack.c.b16 %v131, %v131
    %v136 = vpack.c.b16 %v132, %v132
    %v137 = vpack.c.b16 %v133, %v133
    %v138 = vpack.c.b16 %v134, %v134
    %vm143 = vcmask 781312
    %144 = vst.msk [vmem:[#allocation7] sm:$0xf] %vm143, %v135
    %145 = vst.msk [vmem:[#allocation7 + $0x4] sm:$0xf] %vm143, %v136
    %146 = vst.msk [vmem:[#allocation7 + $0x8] sm:$0xf] %vm143, %v137
    %147 = vst.msk [vmem:[#allocation7 + $0xc] sm:$0xf] %vm143, %v138
    // Predicated region
    $region18: #{tpu_custom_call.1} parent=1 // pred_check
      _
    $region19: #{tpu_custom_call.1} parent=1 // pred_check_branch
      %149 = sbr.rel (0) target = $region21
    $region20: #{tpu_custom_call.1} parent=1 // pred_region
      %s151 = ssub.s32 256, 256
      %152 = vsyncadd [#allocation4], %s151
      %s153 = sshll.u32 [#allocation7], 4
      %s154 = int_to_ptr.vmem [resolvable:$true] %s153
      %159 = dma.vmem_to_hbm [thread:$0]  %s154, 256, %s2, [#allocation4], 64, 64, 4
    $region21: #{tpu_custom_call.1} parent=1 // pred_fallthru
      _
    // Predicated region
    $region22: #{tpu_custom_call.1} parent=1 // pred_check
      _
    $region23: #{tpu_custom_call.1} parent=1 // pred_check_branch
      %161 = sbr.rel (0) target = $region25
    $region24: #{tpu_custom_call.1} parent=1 // pred_region
      %162 = dma.done [#allocation4], 256
    $region25: #{tpu_custom_call.1} parent=1 // pred_fallthru
      _
    %163 = vsyncpa [#allocation3], 1
    %164 = vsyncpa [#allocation6], 1
    %165 = vsyncpa [#allocation4], 1

</llo_original>
